<compile_context>
chip_gen: v7x
topology: tpu7x:2x2x1
jax: 0.10.0
libtpu: 0.0.40
codegen_flags: <defaults>
</compile_context>

<pallas_src>
import jax
import jax.numpy as jnp
from jax.experimental import pallas as pl
from jax.experimental.pallas import tpu as pltpu

LANES = 128
MAX_BLOCK_ROWS = 1024   # 1024 x 128 x 4B = 512 KiB per input per pipeline buffer
NUM_SPLITS = 2          # reduction split across TensorCores (2x on v7x, no-op elsewhere)


def _bce_kernel(logits_ref, targets_ref, out_ref):
    i = pl.program_id(1)  # reduction axis

    @pl.when(i == 0)
    def _():
        out_ref[...] = jnp.zeros_like(out_ref)

    x = logits_ref[...].astype(jnp.float32)
    t = targets_ref[...].astype(jnp.float32)

    # BCE in logits space (equivalent to sigmoid-then-log with PyTorch's -100 clamp):
    #   -log(sigmoid(x))     = softplus(-x) = max(-x, 0) + log1p(exp(-|x|))
    #   -log(1 - sigmoid(x)) = softplus( x) = max( x, 0) + log1p(exp(-|x|))
    lse = jnp.log1p(jnp.exp(-jnp.abs(x)))
    neg_log_p = jnp.minimum(jnp.maximum(-x, 0.0) + lse, 100.0)
    neg_log_1mp = jnp.minimum(jnp.maximum(x, 0.0) + lse, 100.0)
    loss = t * neg_log_p + (1.0 - t) * neg_log_1mp

    # Fold the (block_rows, 128) partial losses into the resident (8, 128)
    # accumulator output block: pure vreg-wise VPU adds, no XLU reduce here.
    rows, lanes = loss.shape
    out_ref[...] += jnp.sum(loss.reshape(rows // 8, 8, lanes), axis=0)


def binary_cross_entropy_loss_2d(logits, targets):
    """Pallas equivalent of BinaryCrossEntropyLoss2d.forward (mean-reduced BCE)."""
    assert logits.shape == targets.shape
    n_valid = logits.size

    lf = logits.reshape(-1)
    tf = targets.reshape(-1)

    # Pick a block size: up to MAX_BLOCK_ROWS rows of 128 lanes, but no bigger
    # than the (8-row aligned) input itself for small tensors.
    rows_needed = pl.cdiv(n_valid, LANES)
    block_rows = min(MAX_BLOCK_ROWS, pl.cdiv(rows_needed, 8) * 8)
    tile = block_rows * LANES

    blocks = pl.cdiv(n_valid, tile)
    blocks = pl.cdiv(blocks, NUM_SPLITS) * NUM_SPLITS  # even split across cores
    n_pad = blocks * tile

    pad = n_pad - n_valid
    if pad:
        # Neutral padding: sigmoid(-100) ~ 0 with target 0 -> loss is exactly 0
        # in f32, so no mask is needed in the kernel.
        # TODO(synk): for very large inputs, handle the ragged tail separately
        # instead of materializing a padded HBM copy.
        lf = jnp.pad(lf, (0, pad), constant_values=-100.0)
        tf = jnp.pad(tf, (0, pad), constant_values=0.0)

    total_rows = n_pad // LANES
    lf2 = lf.reshape(total_rows, LANES)
    tf2 = tf.reshape(total_rows, LANES)

    blocks_per_split = blocks // NUM_SPLITS
    grid = (NUM_SPLITS, blocks_per_split)

    def in_map(c, i):
        return (c * blocks_per_split + i, 0)

    partials = pl.pallas_call(
        _bce_kernel,
        out_shape=jax.ShapeDtypeStruct((NUM_SPLITS * 8, LANES), jnp.float32),
        grid_spec=pltpu.PrefetchScalarGridSpec(
            num_scalar_prefetch=0,
            grid=grid,
            in_specs=[
                pl.BlockSpec((block_rows, LANES), in_map),
                pl.BlockSpec((block_rows, LANES), in_map),
            ],
            out_specs=pl.BlockSpec((8, LANES), lambda c, i: (c, 0)),
        ),
        compiler_params=pltpu.CompilerParams(
            dimension_semantics=("parallel", "arbitrary")
        ),
    )(lf2, tf2)

    # size_average=True -> mean over valid elements. Single tiny reduction.
    return jnp.sum(partials) / jnp.float32(n_valid)


def _reference(logits, targets):
    # Literal PyTorch path: sigmoid then BCELoss with -100 log clamp.
    p = jax.nn.sigmoid(logits.astype(jnp.float32))
    t = targets.astype(jnp.float32)
    lp = jnp.maximum(jnp.log(p), -100.0)
    l1mp = jnp.maximum(jnp.log1p(-p), -100.0)
    return jnp.mean(-(t * lp + (1.0 - t) * l1mp))


if __name__ == "__main__":
    key = jax.random.PRNGKey(0)
    k1, k2 = jax.random.split(key)
    # NCHW inputs, small shapes.
    logits = jax.random.normal(k1, (2, 4, 16, 16), dtype=jnp.float32)
    targets = (jax.random.uniform(k2, (2, 4, 16, 16)) > 0.5).astype(jnp.float32)

    loss = binary_cross_entropy_loss_2d(logits, targets)
    loss = jax.block_until_ready(loss)

    ref = _reference(logits, targets)
    assert jnp.allclose(loss, ref, rtol=1e-5, atol=1e-6), (loss, ref)
    print("KERNEL_OK")
</pallas_src>

<mosaic_0001>
module attributes {stable_mosaic.version = 11 : i64} {
  func.func @_bce_kernel(%arg0: i32, %arg1: i32, %arg2: memref<16x128xf32, #tpu.memory_space<vmem>>, %arg3: memref<16x128xf32, #tpu.memory_space<vmem>>, %arg4: memref<8x128xf32, #tpu.memory_space<vmem>>) attributes {dimension_semantics = [#tpu.dimension_semantics<parallel>, #tpu.dimension_semantics<arbitrary>], iteration_bounds = array<i64: 2, 1>, scalar_prefetch = 0 : i64, scratch_operands = 0 : i64, tpu.core_type = #tpu.core_type<tc>, window_params = [{transform_indices = @transform_0, window_bounds = array<i64: 16, 128>}, {transform_indices = @transform_1, window_bounds = array<i64: 16, 128>}, {transform_indices = @transform_2, window_bounds = array<i64: 8, 128>}]} {
    %c0_i32 = arith.constant 0 : i32
    %0 = arith.cmpi eq, %arg1, %c0_i32 : i32
    %1 = arith.extui %0 : i1 to i32
    %c0_i32_0 = arith.constant 0 : i32
    %2 = arith.cmpi ne, %1, %c0_i32_0 : i32
    scf.if %2 {
      %cst_15 = arith.constant 0.000000e+00 : f32
      %32 = vector.broadcast %cst_15 : f32 to vector<8x128xf32>
      %c0_16 = arith.constant 0 : index
      %c0_17 = arith.constant 0 : index
      %33 = vector.load %arg4[%c0_16, %c0_17] : memref<8x128xf32, #tpu.memory_space<vmem>>, vector<8x128xf32>
      tpu.vector_store %arg4[%c0_16, %c0_17], %32 {strides = array<i32>} : memref<8x128xf32, #tpu.memory_space<vmem>>, vector<8x128xf32>,
    } else {
    }
    %c0 = arith.constant 0 : index
    %c0_1 = arith.constant 0 : index
    %3 = vector.load %arg2[%c0, %c0_1] : memref<16x128xf32, #tpu.memory_space<vmem>>, vector<16x128xf32>
    %c0_2 = arith.constant 0 : index
    %c0_3 = arith.constant 0 : index
    %4 = vector.load %arg3[%c0_2, %c0_3] : memref<16x128xf32, #tpu.memory_space<vmem>>, vector<16x128xf32>
    %5 = math.absf %3 : vector<16x128xf32>
    %cst = arith.constant 0.000000e+00 : f32
    %6 = vector.broadcast %cst : f32 to vector<16x128xf32>
    %7 = arith.subf %6, %5 : vector<16x128xf32>
    %8 = math.exp %7 : vector<16x128xf32>
    %9 = math.log1p %8 : vector<16x128xf32>
    %cst_4 = arith.constant 0.000000e+00 : f32
    %10 = vector.broadcast %cst_4 : f32 to vector<16x128xf32>
    %11 = arith.subf %10, %3 : vector<16x128xf32>
    %cst_5 = arith.constant 0.000000e+00 : f32
    %12 = vector.broadcast %cst_5 : f32 to vector<16x128xf32>
    %13 = arith.maximumf %11, %12 : vector<16x128xf32>
    %14 = arith.addf %13, %9 : vector<16x128xf32>
    %cst_6 = arith.constant 1.000000e+02 : f32
    %15 = vector.broadcast %cst_6 : f32 to vector<16x128xf32>
    %16 = arith.minimumf %14, %15 : vector<16x128xf32>
    %cst_7 = arith.constant 0.000000e+00 : f32
    %17 = vector.broadcast %cst_7 : f32 to vector<16x128xf32>
    %18 = arith.maximumf %3, %17 : vector<16x128xf32>
    %19 = arith.addf %18, %9 : vector<16x128xf32>
    %cst_8 = arith.constant 1.000000e+02 : f32
    %20 = vector.broadcast %cst_8 : f32 to vector<16x128xf32>
    %21 = arith.minimumf %19, %20 : vector<16x128xf32>
    %22 = arith.mulf %4, %16 : vector<16x128xf32>
    %cst_9 = arith.constant 1.000000e+00 : f32
    %23 = vector.broadcast %cst_9 : f32 to vector<16x128xf32>
    %24 = arith.subf %23, %4 : vector<16x128xf32>
    %25 = arith.mulf %24, %21 : vector<16x128xf32>
    %26 = arith.addf %22, %25 : vector<16x128xf32>
    %c0_10 = arith.constant 0 : index
    %c0_11 = arith.constant 0 : index
    %27 = vector.load %arg4[%c0_10, %c0_11] : memref<8x128xf32, #tpu.memory_space<vmem>>, vector<8x128xf32>
    %28 = vector.shape_cast %26 : vector<16x128xf32> to vector<2x8x128xf32>
    %cst_12 = arith.constant dense<0.000000e+00> : vector<8x128xf32>
    %29 = vector.multi_reduction <add>, %28, %cst_12 [0] : vector<2x8x128xf32> to vector<8x128xf32>
    %30 = arith.addf %27, %29 : vector<8x128xf32>
    %c0_13 = arith.constant 0 : index
    %c0_14 = arith.constant 0 : index
    %31 = vector.load %arg4[%c0_13, %c0_14] : memref<8x128xf32, #tpu.memory_space<vmem>>, vector<8x128xf32>
    tpu.vector_store %arg4[%c0_13, %c0_14], %30 {strides = array<i32>} : memref<8x128xf32, #tpu.memory_space<vmem>>, vector<8x128xf32>,
    return
  }
  func.func @transform_0(%arg0: i32, %arg1: i32) -> (i32, i32) {
    %c1_i32 = arith.constant 1 : i32
    %0 = arith.muli %arg0, %c1_i32 : i32
    %1 = arith.addi %0, %arg1 : i32
    %c0_i32 = arith.constant 0 : i32
    %c0_i32_0 = arith.constant 0 : i32
    return %1, %c0_i32 : i32, i32
  }
  func.func @transform_1(%arg0: i32, %arg1: i32) -> (i32, i32) {
    %c1_i32 = arith.constant 1 : i32
    %0 = arith.muli %arg0, %c1_i32 : i32
    %1 = arith.addi %0, %arg1 : i32
    %c0_i32 = arith.constant 0 : i32
    %c0_i32_0 = arith.constant 0 : i32
    return %1, %c0_i32 : i32, i32
  }
  func.func @transform_2(%arg0: i32, %arg1: i32) -> (i32, i32) {
    %c0_i32 = arith.constant 0 : i32
    %c0_i32_0 = arith.constant 0 : i32
    return %arg0, %c0_i32 : i32, i32
  }
}

</mosaic_0001>

<llo_original>
// kernel: tpu_custom_call.1
$region0: #{tpu_custom_call.1}
  #allocation0 [shape = 'u32[]', space=smem, size = 0x4, offset = 0x4, fixed_abs, tag = 'smem constant byte address 0x4 - core index']
  #allocation1 [shape = 'u32[144,128]{1,0:T(1,128)}', space=vmem, size = 0x12000, scoped, tag = 'internal scratch']
  %s0 = inlined_call_operand.hbm [shape: f32[32,128], index: 0, kind: input, shape index: {}]
  %s1 = inlined_call_operand.hbm [shape: f32[32,128], index: 1, kind: input, shape index: {}]
  %s2 = inlined_call_operand.hbm [shape: f32[16,128], index: 2, kind: output, shape index: {}]
  %s3 = sld [smem:[#allocation0]]
  $region53: #{tpu_custom_call.1} parent=0
    _
  %s5 = ssub.s32 1, %s3
  %s6 = scalar_select 0, %s5, %s3
  $region1: #{tpu_custom_call.1} parent=0
    #allocation2 [shape = 'u8[16384]{0}', space=vmem, size = 0x4000, scoped, tag = 'input window, operand 0']
    #allocation3 [shape = 's32[2]{0}', space=sflag, size = 0x8, scoped, tag = 'scoped memory for tpu_custom_call.1']
    #allocation4 [shape = 's32[2]{0}', space=sflag, size = 0x8, scoped, tag = 'scoped memory for tpu_custom_call.1']
    #allocation5 [shape = 'u8[16384]{0}', space=vmem, size = 0x4000, scoped, tag = 'input window, operand 1']
    #allocation6 [shape = 's32[2]{0}', space=sflag, size = 0x8, scoped, tag = 'scoped memory for tpu_custom_call.1']
    #allocation7 [shape = 'u8[8192]{0}', space=vmem, size = 0x2000, scoped, tag = 'output window, operand 0']
    %7 = vsyncpa [#allocation3], 0
    %s8 = scalar_lea.sflag [#allocation3], 1
    %9 = vsyncpa %s8, 0
    %10 = vsyncpa [#allocation6], 0
    %s11 = scalar_lea.sflag [#allocation6], 1
    %12 = vsyncpa %s11, 0
    %13 = vsyncpa [#allocation4], 0
    %s14 = scalar_lea.sflag [#allocation4], 1
    %15 = vsyncpa %s14, 0
    loop: start=0, step=1, limit=4
    $region2: #{tpu_custom_call.1} parent=1 // loop_pre_header
      _
    $region3: #{tpu_custom_call.1} parent=1 // loop_header
      %s17 = sphi 0, %s21
      %p18 = scmp.ge.s32.totalorder %s17, 4
      %s24 = sphi 0, %s36
      %s25 = sphi 0, %s32
      %s26 = sphi 0, %s24
      %s27 = sphi 0, %s25
      %s28 = sphi 0, %s26
      %s29 = sphi 0, %s27
      %s41 = sphi 0, %s43
      %s44 = sphi 0, %s41
      %s45 = sphi 0, %s44
      %s61 = sphi 0, %s45
      %s69 = sphi 0, %s71
      %s72 = sphi 0, %s69
      %s73 = sphi 0, %s72
      %s89 = sphi 0, %s73
      %s95 = sphi 0, %s97
      %s98 = sphi 0, %s95
      %s99 = sphi 0, %s98
      %s115 = sphi 0, %s99
    $region4: #{tpu_custom_call.1} parent=1 // loop_header_branch
      %20 = sbr.rel (%p18) target = $region8
    $region5: #{tpu_custom_call.1} parent=1 // loop_body
      %s22 = ssub.s32 %s17, 1
      %s23 = ssub.s32 %s17, 2
      %s30 = sadd.s32 1, %s25
      %p31 = scmp.ge.s32.totalorder %s30, 1
      %s32 = scalar_select %p31, 0, %s30
      %s33 = sadd.s32 1, %s24
      %s34 = scalar_select %p31, %s33, %s24
      %p35 = scmp.ge.s32.totalorder %s34, 2
      %s36 = scalar_select %p35, 0, %s34
      %s37 = sadd.s32 %s24, %s25
      %s38 = sadd.s32 %s36, %s32
      %s39 = ssub.s32 %s37, %s38
      %p40 = scmp.eq.s32.totalorder %s39, 0
      %s42 = sadd.s32 %s41, 1
      %s43 = scalar_select %p40, %s41, %s42
      %p46 = pneg %p40
      %p47 = scmp.eq.s32.totalorder %s17, 1
      %p48 = por %p46, %p47
      %p49 = scmp.ne.s32.totalorder %s41, %s44
      %p50 = scmp.eq.s32.totalorder %s17, 0
      %p51 = por %p49, %p50
      %p52 = scmp.ne.s32.totalorder %s41, %s44
      %p53 = scmp.eq.s32.totalorder %s22, 1
      %p54 = por %p52, %p53
      %p55 = scmp.ne.s32.totalorder %s44, %s45
      %p56 = scmp.eq.s32.totalorder %s22, 0
      %p57 = por %p55, %p56
      %p58 = scmp.ne.s32.totalorder %s44, %s45
      %p59 = scmp.eq.s32.totalorder %s23, 1
      %p60 = por %p58, %p59
      %p62 = scmp.ne.s32.totalorder %s45, %s61
      %p63 = scmp.eq.s32.totalorder %s23, 0
      %p64 = por %p62, %p63
      %s65 = sadd.s32 %s24, %s25
      %s66 = sadd.s32 %s36, %s32
      %s67 = ssub.s32 %s65, %s66
      %p68 = scmp.eq.s32.totalorder %s67, 0
      %s70 = sadd.s32 %s69, 1
      %s71 = scalar_select %p68, %s69, %s70
      %p74 = pneg %p68
      %p75 = scmp.eq.s32.totalorder %s17, 1
      %p76 = por %p74, %p75
      %p77 = scmp.ne.s32.totalorder %s69, %s72
      %p78 = scmp.eq.s32.totalorder %s17, 0
      %p79 = por %p77, %p78
      %p80 = scmp.ne.s32.totalorder %s69, %s72
      %p81 = scmp.eq.s32.totalorder %s22, 1
      %p82 = por %p80, %p81
      %p83 = scmp.ne.s32.totalorder %s72, %s73
      %p84 = scmp.eq.s32.totalorder %s22, 0
      %p85 = por %p83, %p84
      %p86 = scmp.ne.s32.totalorder %s72, %s73
      %p87 = scmp.eq.s32.totalorder %s23, 1
      %p88 = por %p86, %p87
      %p90 = scmp.ne.s32.totalorder %s73, %s89
      %p91 = scmp.eq.s32.totalorder %s23, 0
      %p92 = por %p90, %p91
      %s93 = ssub.s32 %s24, %s36
      %p94 = scmp.eq.s32.totalorder %s93, 0
      %s96 = sadd.s32 %s95, 1
      %s97 = scalar_select %p94, %s95, %s96
      %p100 = pneg %p94
      %p101 = scmp.eq.s32.totalorder %s17, 1
      %p102 = por %p100, %p101
      %p103 = scmp.ne.s32.totalorder %s95, %s98
      %p104 = scmp.eq.s32.totalorder %s17, 0
      %p105 = por %p103, %p104
      %p106 = scmp.ne.s32.totalorder %s95, %s98
      %p107 = scmp.eq.s32.totalorder %s22, 1
      %p108 = por %p106, %p107
      %p109 = scmp.ne.s32.totalorder %s98, %s99
      %p110 = scmp.eq.s32.totalorder %s22, 0
      %p111 = por %p109, %p110
      %p112 = scmp.ne.s32.totalorder %s98, %s99
      %p113 = scmp.eq.s32.totalorder %s23, 1
      %p114 = por %p112, %p113
      %p116 = scmp.ne.s32.totalorder %s99, %s115
      %p117 = scmp.eq.s32.totalorder %s23, 0
      %p118 = por %p116, %p117
      %p119 = scmp.le.s32.totalorder 1, %s17
      %p120 = scmp.lt.s32.totalorder %s17, 3
      %p121 = pnand %p119, %p120
      %p122 = pneg %p121
      // Predicated region
      $region9: #{tpu_custom_call.1} parent=5 // pred_check
        _
      $region10: #{tpu_custom_call.1} parent=5 // pred_check_branch
        %124 = sbr.rel (%p121) target = $region12
      $region11: #{tpu_custom_call.1} parent=5 // pred_region
        %s125 = ssub.s32 %s17, 1
      $region12: #{tpu_custom_call.1} parent=5 // pred_fallthru
        _
      %p126 = scmp.lt.s32.totalorder %s17, 2
      // Predicated region
      $region13: #{tpu_custom_call.1} parent=5 // pred_check
        %p127 = pneg %p126
      $region14: #{tpu_custom_call.1} parent=5 // pred_check_branch
        %129 = sbr.rel (%p127) target = $region16
      $region15: #{tpu_custom_call.1} parent=5 // pred_region
        // Predicated region
        $region17: #{tpu_custom_call.1} parent=15 // pred_check
          %p130 = pneg %p51
        $region18: #{tpu_custom_call.1} parent=15 // pred_check_branch
          %132 = sbr.rel (%p130) target = $region20
        $region19: #{tpu_custom_call.1} parent=15 // pred_region
          %s133 = sand.u32 %s41, 1
          %s134 = scalar_lea.sflag [#allocation3], %s133
          %s135 = sand.u32 %s41, 1
          %s136 = smul.addr %s135, 16
          %s137 = scalar_lea.vmem [#allocation2], %s136
          %s138 = sadd.s32 %s24, %s25
          %s139 = smul.u32 2, %s138
          %s141 = ssub.s32 256, 256
          %142 = vsyncadd %s134, %s141
          %s143 = smul.addr %s139, 128
          %s144 = scalar_lea.hbm %s0, %s143
          %s145 = sshll.u32 %s137, 4
          %s146 = int_to_ptr.vmem [resolvable:$true] %s145
          %151 = dma.hbm_to_vmem [thread:$0]  %s144, 256, %s146, %s134, 128, 128, 8
        $region20: #{tpu_custom_call.1} parent=15 // pred_fallthru
          _
        // Predicated region
        $region21: #{tpu_custom_call.1} parent=15 // pred_check
          %p152 = pneg %p79
        $region22: #{tpu_custom_call.1} parent=15 // pred_check_branch
          %154 = sbr.rel (%p152) target = $region24
        $region23: #{tpu_custom_call.1} parent=15 // pred_region
          %s155 = sand.u32 %s69, 1
          %s156 = scalar_lea.sflag [#allocation6], %s155
          %s157 = sand.u32 %s69, 1
          %s158 = smul.addr %s157, 16
          %s159 = scalar_lea.vmem [#allocation5], %s158
          %s160 = sadd.s32 %s24, %s25
          %s161 = smul.u32 2, %s160
          %s163 = ssub.s32 256, 256
          %164 = vsyncadd %s156, %s163
          %s165 = smul.addr %s161, 128
          %s166 = scalar_lea.hbm %s1, %s165
          %s167 = sshll.u32 %s159, 4
          %s168 = int_to_ptr.vmem [resolvable:$true] %s167
          %173 = dma.hbm_to_vmem [thread:$0]  %s166, 256, %s168, %s156, 128, 128, 8
        $region24: #{tpu_custom_call.1} parent=15 // pred_fallthru
          _
      $region16: #{tpu_custom_call.1} parent=5 // pred_fallthru
        _
      %p174 = scmp.le.s32.totalorder 1, %s17
      %p175 = scmp.lt.s32.totalorder %s17, 3
      %p176 = pnand %p174, %p175
      %p177 = pneg %p176
      // Predicated region
      $region25: #{tpu_custom_call.1} parent=5 // pred_check
        _
      $region26: #{tpu_custom_call.1} parent=5 // pred_check_branch
        %179 = sbr.rel (%p176) target = $region28
      $region27: #{tpu_custom_call.1} parent=5 // pred_region
        %s180 = ssub.s32 %s17, 1
        %s181 = sand.u32 %s44, 1
        %s182 = scalar_lea.sflag [#allocation3], %s181
        %s183 = sand.u32 %s44, 1
        %s184 = smul.addr %s183, 16
        %s185 = scalar_lea.vmem [#allocation2], %s184
        // Predicated region
        $region29: #{tpu_custom_call.1} parent=27 // pred_check
          %p186 = pneg %p57
        $region30: #{tpu_custom_call.1} parent=27 // pred_check_branch
          %188 = sbr.rel (%p186) target = $region32
        $region31: #{tpu_custom_call.1} parent=27 // pred_region
          %189 = dma.done %s182, 256
        $region32: #{tpu_custom_call.1} parent=27 // pred_fallthru
          _
        %s190 = sand.u32 %s72, 1
        %s191 = scalar_lea.sflag [#allocation6], %s190
        %s192 = sand.u32 %s72, 1
        %s193 = smul.addr %s192, 16
        %s194 = scalar_lea.vmem [#allocation5], %s193
        // Predicated region
        $region33: #{tpu_custom_call.1} parent=27 // pred_check
          %p195 = pneg %p85
        $region34: #{tpu_custom_call.1} parent=27 // pred_check_branch
          %197 = sbr.rel (%p195) target = $region36
        $region35: #{tpu_custom_call.1} parent=27 // pred_region
          %198 = dma.done %s191, 256
        $region36: #{tpu_custom_call.1} parent=27 // pred_fallthru
          _
        %s199 = sand.u32 %s44, 1
        %s200 = scalar_lea.sflag [#allocation3], %s199
        %s201 = sand.u32 %s44, 1
        %s202 = smul.addr %s201, 16
        %s203 = scalar_lea.vmem [#allocation2], %s202
        %p204 = pneg %p57
        %p205 = pneg %p54
        %s206 = sand.u32 %s72, 1
        %s207 = scalar_lea.sflag [#allocation6], %s206
        %s208 = sand.u32 %s72, 1
        %s209 = smul.addr %s208, 16
        %s210 = scalar_lea.vmem [#allocation5], %s209
        %p211 = pneg %p85
        %p212 = pneg %p82
        %p213 = pneg %p111
        %p214 = pneg %p108
        %s215 = sand.u32 %s98, 1
        %s216 = scalar_lea.sflag [#allocation4], %s215
        %s217 = sand.u32 %s98, 1
        %s218 = smul.addr %s217, 8
        %s219 = scalar_lea.vmem [#allocation7], %s218
        %s220 = sadd.s32 %s26, %s27
        %s221 = smul.u32 2, %s220
        %s222 = sadd.s32 %s26, %s27
        %s223 = smul.u32 2, %s222
        %p224 = scmp.eq.s32.totalorder %s27, 0
        // Predicated region
        $region37: #{tpu_custom_call.1} parent=27 // pred_check
          %p225 = pneg %p224
        $region38: #{tpu_custom_call.1} parent=27 // pred_check_branch
          %227 = sbr.rel (%p225) target = $region40
        $region39: #{tpu_custom_call.1} parent=27 // pred_region
          %228 = vst [vmem:[%s219] sm:$0xff] 0.0
        $region40: #{tpu_custom_call.1} parent=27 // pred_fallthru
          _
        %v229 = vld [vmem:[%s185] sm:$0xff]
        %v230 = vld [vmem:[%s185 + $0x8] sm:$0xff]
        %v231 = vld [vmem:[%s194] sm:$0xff]
        %v232 = vld [vmem:[%s194 + $0x8] sm:$0xff]
        %v233 = vand.u32 2147483647, %v229
        %v234 = vand.u32 2147483647, %v230
        %v235 = vsub.f32 0.0, %v233
        %v236 = vsub.f32 0.0, %v234
        %v237 = vmul.f32 %v235, 1.442695
        %v238 = vpow.pop %v237
        %v239 = vmul.f32 %v236, 1.442695
        %v240 = vpow.pop %v239
        %v241 = vadd.f32 %v238, 1.0
        %v242 = vlog2.pop %v241
        %v243 = vmul.f32 %v242, 0.6931472
        %v244 = vmul.f32 -0.5, %v238
        %v245 = vadd.f32 %v244, 1.0
        %v246 = vmul.f32 %v245, %v238
        %v247 = vand.u32 2147483647, %v238
        %vm248 = vcmp.lt.f32.partialorder %v247, 0.0004427343
        %v249 = vsel %vm248, %v246, %v243
        %v250 = vadd.f32 %v240, 1.0
        %v251 = vlog2.pop %v250
        %v252 = vmul.f32 %v251, 0.6931472
        %v253 = vmul.f32 -0.5, %v240
        %v254 = vadd.f32 %v253, 1.0
        %v255 = vmul.f32 %v254, %v240
        %v256 = vand.u32 2147483647, %v240
        %vm257 = vcmp.lt.f32.partialorder %v256, 0.0004427343
        %v258 = vsel %vm257, %v255, %v252
        %v259 = vsub.f32 0.0, %v229
        %v260 = vsub.f32 0.0, %v230
        %v261 = vmax.f32 %v259, 0.0
        %v262 = vmax.f32 %v260, 0.0
        %v263 = vadd.f32 %v261, %v249
        %v264 = vadd.f32 %v262, %v258
        %v265 = vmin.f32 %v263, 100.0
        %v266 = vmin.f32 %v264, 100.0
        %v267 = vmax.f32 %v229, 0.0
        %v268 = vmax.f32 %v230, 0.0
        %v269 = vadd.f32 %v267, %v249
        %v270 = vadd.f32 %v268, %v258
        %v271 = vmin.f32 %v269, 100.0
        %v272 = vmin.f32 %v270, 100.0
        %v273 = vmul.f32 %v231, %v265
        %v274 = vmul.f32 %v232, %v266
        %v275 = vsub.f32 1.0, %v231
        %v276 = vsub.f32 1.0, %v232
        %v277 = vmul.f32 %v275, %v271
        %v278 = vmul.f32 %v276, %v272
        %v279 = vadd.f32 %v273, %v277
        %v280 = vadd.f32 %v274, %v278
        %v281 = vld [vmem:[%s219] sm:$0xff]
        %v282 = vadd.f32 %v279, %v280
        %v283 = vadd.f32 %v281, %v282
        %284 = vst [vmem:[%s219] sm:$0xff] %v283
        %s285 = sand.u32 %s98, 1
        %s286 = scalar_lea.sflag [#allocation4], %s285
        %s287 = sand.u32 %s98, 1
        %s288 = smul.addr %s287, 8
        %s289 = scalar_lea.vmem [#allocation7], %s288
        // Predicated region
        $region41: #{tpu_custom_call.1} parent=27 // pred_check
          %p290 = pneg %p108
        $region42: #{tpu_custom_call.1} parent=27 // pred_check_branch
          %292 = sbr.rel (%p290) target = $region44
        $region43: #{tpu_custom_call.1} parent=27 // pred_region
          %s294 = ssub.s32 128, 128
          %295 = vsyncadd %s286, %s294
          %s296 = smul.addr %s26, 128
          %s297 = scalar_lea.hbm %s2, %s296
          %s299 = sshll.u32 %s289, 4
          %s300 = int_to_ptr.vmem [resolvable:$true] %s299
          %302 = dma.vmem_to_hbm [thread:$0]  %s300, 128, %s297, %s286
        $region44: #{tpu_custom_call.1} parent=27 // pred_fallthru
          _
      $region28: #{tpu_custom_call.1} parent=5 // pred_fallthru
        _
      %p303 = scmp.le.s32.totalorder 2, %s17
      // Predicated region
      $region45: #{tpu_custom_call.1} parent=5 // pred_check
        %p304 = pneg %p303
      $region46: #{tpu_custom_call.1} parent=5 // pred_check_branch
        %306 = sbr.rel (%p304) target = $region48
      $region47: #{tpu_custom_call.1} parent=5 // pred_region
        %s307 = ssub.s32 %s17, 2
        // Predicated region
        $region49: #{tpu_custom_call.1} parent=47 // pred_check
          %p308 = pneg %p114
        $region50: #{tpu_custom_call.1} parent=47 // pred_check_branch
          %310 = sbr.rel (%p308) target = $region52
        $region51: #{tpu_custom_call.1} parent=47 // pred_region
          %s311 = sand.u32 %s99, 1
          %s312 = scalar_lea.sflag [#allocation4], %s311
          %s313 = sand.u32 %s99, 1
          %s314 = smul.addr %s313, 8
          %s315 = scalar_lea.vmem [#allocation7], %s314
          %316 = dma.done %s312, 128
        $region52: #{tpu_custom_call.1} parent=47 // pred_fallthru
          _
      $region48: #{tpu_custom_call.1} parent=5 // pred_fallthru
        _
    $region6: #{tpu_custom_call.1} parent=1 // loop_footer
      %s21 = sadd.s32 1, %s17
    $region7: #{tpu_custom_call.1} parent=1 // loop_footer_branch
      %16 = sbr.rel target = $region3
    $region8: #{tpu_custom_call.1} parent=1 // loop_exit
      _
    %317 = vsyncpa [#allocation3], 1
    %s318 = scalar_lea.sflag [#allocation3], 1
    %319 = vsyncpa %s318, 1
    %320 = vsyncpa [#allocation6], 1
    %s321 = scalar_lea.sflag [#allocation6], 1
    %322 = vsyncpa %s321, 1
    %323 = vsyncpa [#allocation4], 1
    %s324 = scalar_lea.sflag [#allocation4], 1
    %325 = vsyncpa %s324, 1

</llo_original>
